<compile_context>
chip_gen: v7x
topology: tpu7x:2x2x1
jax: 0.10.0
libtpu: 0.0.40
codegen_flags: <defaults>
</compile_context>

<pallas_src>
import jax
import jax.numpy as jnp
from jax.experimental import pallas as pl
from jax.experimental.pallas import tpu as pltpu


def _attention_kernel(enc_ref, v_ref, ctx_ref):
    """One batch tile per grid step.

    enc_ref : (B_TILE, S, H)   VMEM   encoder tile (bf16 or f32 storage)
    v_ref   : (1, H)           VMEM   folded logit vector (f32)
    ctx_ref : (B_TILE, H)      VMEM   context output
    """
    v_enc = v_ref[...].astype(jnp.float32)                       # (1, H)

    # ---- pass 1: attention logits -- VPU broadcast-multiply + lane reduce ----
    enc = enc_ref[...].astype(jnp.float32)                       # (BT, S, H)
    logits = jnp.sum(enc * v_enc[None, :, :], axis=-1)           # (BT, S)

    # numerically stable softmax over the sequence axis
    logits = logits - jnp.max(logits, axis=-1, keepdims=True)
    p = jnp.exp(logits)
    p = p * pl.reciprocal(jnp.sum(p, axis=-1, keepdims=True), approx=True)

    # ---- pass 2: context = attn_weights @ enc, as VPU multiply + sublane reduce ----
    # Re-read enc_ref so the full (BT, S, H) value need not stay live across
    # both passes once b_tile grows to thousands of rows (avoids vreg spills);
    # for very large tiles this could be further chunked over S with a
    # fori_loop(unroll=True).
    enc2 = enc_ref[...].astype(jnp.float32)
    ctx = jnp.sum(p[:, :, None] * enc2, axis=1)                  # (BT, H)
    ctx_ref[...] = ctx.astype(ctx_ref.dtype)


def _choose_b_tile(batch, seq, hidden, enc_bytes):
    """Pick the batch tile: as big as VMEM comfortably allows, >= 2 grid steps."""
    # bytes per batch row per step: encoder slab + f32 output row
    row_bytes = max(seq * hidden * enc_bytes + hidden * 4, 1)
    # keep the double-buffered working set <= ~40 MiB so it fits inside v7x's
    # 64 MiB physical VMEM with headroom (v5e/v6e 128 MiB are trivially fine).
    cap = max(8, ((20 << 20) // row_bytes) // 8 * 8)
    # prefer >= 2 grid steps so the "parallel" batch axis can shard across
    # v7x's two TensorCores; otherwise each step is as large as possible.
    half = -(-batch // 2)                     # ceil(B / 2)
    half = max(8, ((half + 7) // 8) * 8)      # round up to sublane multiple
    return min(cap, half)


def attention_forward(hidden_state, encoder_outputs, params, *,
                      enc_dtype=jnp.bfloat16, b_tile=None):
    """hidden_state: (B, H), encoder_outputs: (B, S, H) -> context: (B, H).

    `hidden_state` is accepted for fidelity with the PyTorch module but does
    not affect the result: with no nonlinearity in the chain, its logit
    contribution is constant along the sequence axis and cancels under softmax.
    """
    del hidden_state  # mathematically dead (softmax shift invariance)
    B, S, H = encoder_outputs.shape
    out_dtype = encoder_outputs.dtype
    w1, w2, w3, w_out = params["w1"], params["w2"], params["w3"], params["w_out"]

    # ---- Fold the activation-free affine chain once, outside the kernel ----
    # logits[b, s] = enc[b, s] . v_enc   (+ per-row constant, dead under softmax)
    a1 = (w_out @ w3) @ w2                          # (1, H)
    v_full = a1 @ w1                                # (1, 2H) = w_out @ W3 @ W2 @ W1
    v_enc = v_full[:, :H].astype(jnp.float32)       # (1, H); hid half + biases cancel

    enc_bytes = jnp.dtype(enc_dtype).itemsize
    if b_tile is None:
        b_tile = _choose_b_tile(B, S, H, enc_bytes)
    b_tile = max(8, (int(b_tile) // 8) * 8)

    # ---- Pad the batch to a multiple of the tile (padded rows sliced off) ----
    B_pad = ((B + b_tile - 1) // b_tile) * b_tile
    enc = encoder_outputs.astype(enc_dtype)   # ideally the producer emits bf16 already
    if B_pad != B:
        enc = jnp.pad(enc, ((0, B_pad - B), (0, 0), (0, 0)))

    grid = (B_pad // b_tile,)

    # Raise the scoped VMEM limit to cover the double-buffered encoder tile
    # (plus output), capped well below v7x's 64 MiB physical VMEM.
    step_bytes = b_tile * (S * H * enc_bytes + H * 4)
    vmem_limit = int(min(60 << 20, max(32 << 20, 2.5 * step_bytes + (2 << 20))))

    # NOTE: with small H (< 128, as in the test) the last-dim lanes are only
    # partially dense; for production shapes with H < 128 consider a lane-dense
    # (B, S*H) flattened layout or padding H to 128.  For H >= 128 this layout
    # is already lane-dense.

    out = pl.pallas_call(
        _attention_kernel,
        out_shape=jax.ShapeDtypeStruct((B_pad, H), out_dtype),
        grid_spec=pltpu.PrefetchScalarGridSpec(
            num_scalar_prefetch=0,
            grid=grid,
            in_specs=[
                pl.BlockSpec((b_tile, S, H), lambda b: (b, 0, 0)),   # encoder tile
                pl.BlockSpec((1, H), lambda b: (0, 0)),              # folded v_enc
            ],
            out_specs=pl.BlockSpec((b_tile, H), lambda b: (b, 0)),
        ),
        compiler_params=pltpu.CompilerParams(
            dimension_semantics=("parallel",),
            vmem_limit_bytes=vmem_limit,
        ),
    )(enc, v_enc)
    return out[:B]


def attention_reference(hidden_state, encoder_outputs, params):
    """Pure-JAX reference mirroring the PyTorch forward layer-by-layer."""
    B, S, H = encoder_outputs.shape
    hid = jnp.broadcast_to(hidden_state[:, None, :], (B, S, H))
    m = jnp.concatenate([encoder_outputs, hid], axis=2).reshape(-1, 2 * H)
    x = m @ params["w1"].T + params["b1"]
    x = x @ params["w2"].T + params["b2"]
    x = x @ params["w3"].T + params["b3"]
    aw = (x @ params["w_out"].T).reshape(B, S)
    aw = jax.nn.softmax(aw, axis=1)
    ctx = jnp.einsum("bs,bsh->bh", aw, encoder_outputs)
    return ctx


def init_params(key, hidden_size):
    """Deterministic parameter init matching nn.Linear shapes (out, in)."""
    ks = jax.random.split(key, 7)
    H = hidden_size
    u = lambda k, shape, fan_in: jax.random.uniform(
        k, shape, jnp.float32, -1.0 / jnp.sqrt(fan_in), 1.0 / jnp.sqrt(fan_in))
    return {
        "w1": u(ks[0], (H, 2 * H), 2 * H),
        "b1": u(ks[1], (H,), 2 * H),
        "w2": u(ks[2], (H, H), H),
        "b2": u(ks[3], (H,), H),
        "w3": u(ks[4], (H, H), H),
        "b3": u(ks[5], (H,), H),
        "w_out": u(ks[6], (1, H), H),   # to_weight: Linear(H, 1, bias=False)
    }


if __name__ == "__main__":
    B, S, H = 16, 8, 32            # 2 parallel grid steps of 8 batch rows each
    key = jax.random.PRNGKey(0)
    k_p, k_h, k_e = jax.random.split(key, 3)

    params = init_params(k_p, H)
    hidden_state = jax.random.normal(k_h, (B, H), jnp.float32)
    encoder_outputs = jax.random.normal(k_e, (B, S, H), jnp.float32)

    ref = attention_reference(hidden_state, encoder_outputs, params)

    # f32 encoder storage: checks the kernel math (folded chain + softmax + ctx).
    ctx_f32 = jax.block_until_ready(
        attention_forward(hidden_state, encoder_outputs, params,
                          enc_dtype=jnp.float32))
    assert ctx_f32.shape == (B, H)
    assert jnp.allclose(ctx_f32, ref, atol=1e-2, rtol=1e-2), "mismatch (f32 path)"

    # default bf16 encoder storage (halves HBM traffic): looser tolerance.
    ctx_bf16 = jax.block_until_ready(
        attention_forward(hidden_state, encoder_outputs, params))
    assert ctx_bf16.shape == (B, H)
    assert jnp.allclose(ctx_bf16, ref, atol=3e-2, rtol=3e-2), "mismatch (bf16 path)"

    # batch-padding path (B not a multiple of the tile).
    ctx_pad = jax.block_until_ready(
        attention_forward(hidden_state[:5], encoder_outputs[:5], params,
                          enc_dtype=jnp.float32))
    ref_pad = attention_reference(hidden_state[:5], encoder_outputs[:5], params)
    assert ctx_pad.shape == (5, H)
    assert jnp.allclose(ctx_pad, ref_pad, atol=1e-2, rtol=1e-2), "mismatch (padded batch)"

    print("KERNEL_OK")
</pallas_src>

<mosaic_0001>
module attributes {stable_mosaic.version = 11 : i64} {
  func.func @_attention_kernel(%arg0: i32, %arg1: memref<8x8x32xf32, #tpu.memory_space<vmem>>, %arg2: memref<1x32xf32, #tpu.memory_space<vmem>>, %arg3: memref<8x32xf32, #tpu.memory_space<vmem>>) attributes {dimension_semantics = [#tpu.dimension_semantics<parallel>], iteration_bounds = array<i64: 2>, scalar_prefetch = 0 : i64, scratch_operands = 0 : i64, tpu.core_type = #tpu.core_type<tc>, window_params = [{transform_indices = @transform_0, window_bounds = array<i64: 8, 8, 32>}, {pipeline_mode = #tpu.pipeline_mode<synchronous>, transform_indices = @transform_1, window_bounds = array<i64: 1, 32>}, {transform_indices = @transform_2, window_bounds = array<i64: 8, 32>}]} {
    %c0 = arith.constant 0 : index
    %c0_0 = arith.constant 0 : index
    %0 = vector.load %arg2[%c0, %c0_0] : memref<1x32xf32, #tpu.memory_space<vmem>>, vector<1x32xf32>
    %c0_1 = arith.constant 0 : index
    %c0_2 = arith.constant 0 : index
    %c0_3 = arith.constant 0 : index
    %1 = vector.load %arg1[%c0_1, %c0_2, %c0_3] : memref<8x8x32xf32, #tpu.memory_space<vmem>>, vector<8x8x32xf32>
    %2 = vector.shape_cast %0 : vector<1x32xf32> to vector<1x1x32xf32>
    %3 = vector.broadcast %2 : vector<1x1x32xf32> to vector<8x8x32xf32>
    %4 = arith.mulf %1, %3 : vector<8x8x32xf32>
    %cst = arith.constant dense<0.000000e+00> : vector<8x8xf32>
    %5 = vector.multi_reduction <add>, %4, %cst [2] : vector<8x8x32xf32> to vector<8x8xf32>
    %cst_4 = arith.constant dense<0xFF800000> : vector<8xf32>
    %6 = vector.multi_reduction <maximumf>, %5, %cst_4 [1] : vector<8x8xf32> to vector<8xf32>
    %7 = vector.shape_cast %6 : vector<8xf32> to vector<8x1xf32>
    %8 = vector.broadcast %7 : vector<8x1xf32> to vector<8x8xf32>
    %9 = arith.subf %5, %8 : vector<8x8xf32>
    %10 = math.exp %9 : vector<8x8xf32>
    %cst_5 = arith.constant dense<0.000000e+00> : vector<8xf32>
    %11 = vector.multi_reduction <add>, %10, %cst_5 [1] : vector<8x8xf32> to vector<8xf32>
    %12 = vector.shape_cast %11 : vector<8xf32> to vector<8x1xf32>
    %13 = tpu.reciprocal %12 {approx = true} : vector<8x1xf32> -> vector<8x1xf32>
    %14 = vector.broadcast %13 : vector<8x1xf32> to vector<8x8xf32>
    %15 = arith.mulf %10, %14 : vector<8x8xf32>
    %c0_6 = arith.constant 0 : index
    %c0_7 = arith.constant 0 : index
    %c0_8 = arith.constant 0 : index
    %16 = vector.load %arg1[%c0_6, %c0_7, %c0_8] : memref<8x8x32xf32, #tpu.memory_space<vmem>>, vector<8x8x32xf32>
    %17 = vector.shape_cast %15 : vector<8x8xf32> to vector<8x8x1xf32>
    %18 = vector.broadcast %17 : vector<8x8x1xf32> to vector<8x8x32xf32>
    %19 = arith.mulf %18, %16 : vector<8x8x32xf32>
    %cst_9 = arith.constant dense<0.000000e+00> : vector<8x32xf32>
    %20 = vector.multi_reduction <add>, %19, %cst_9 [1] : vector<8x8x32xf32> to vector<8x32xf32>
    %c0_10 = arith.constant 0 : index
    %c0_11 = arith.constant 0 : index
    %21 = vector.load %arg3[%c0_10, %c0_11] : memref<8x32xf32, #tpu.memory_space<vmem>>, vector<8x32xf32>
    tpu.vector_store %arg3[%c0_10, %c0_11], %20 {strides = array<i32>} : memref<8x32xf32, #tpu.memory_space<vmem>>, vector<8x32xf32>,
    return
  }
  func.func @transform_0(%arg0: i32) -> (i32, i32, i32) {
    %c0_i32 = arith.constant 0 : i32
    %c0_i32_0 = arith.constant 0 : i32
    %c0_i32_1 = arith.constant 0 : i32
    return %arg0, %c0_i32, %c0_i32_0 : i32, i32, i32
  }
  func.func @transform_1(%arg0: i32) -> (i32, i32) {
    %c0_i32 = arith.constant 0 : i32
    %c0_i32_0 = arith.constant 0 : i32
    %c0_i32_1 = arith.constant 0 : i32
    return %c0_i32, %c0_i32_0 : i32, i32
  }
  func.func @transform_2(%arg0: i32) -> (i32, i32) {
    %c0_i32 = arith.constant 0 : i32
    %c0_i32_0 = arith.constant 0 : i32
    return %arg0, %c0_i32 : i32, i32
  }
}

</mosaic_0001>

<llo_original>
// kernel: tpu_custom_call.1
$region0: #{tpu_custom_call.1}
  #allocation0 [shape = 'u32[]', space=smem, size = 0x4, offset = 0x4, fixed_abs, tag = 'smem constant byte address 0x4 - core index']
  #allocation1 [shape = 'u32[144,128]{1,0:T(1,128)}', space=vmem, size = 0x12000, scoped, tag = 'internal scratch']
  %s0 = inlined_call_operand.hbm [shape: f32[16,8,32], index: 0, kind: input, shape index: {}]
  %s1 = inlined_call_operand.vmem [shape: f32[1,32], index: 1, kind: input, shape index: {}]
  %s2 = inlined_call_operand.hbm [shape: f32[16,32], index: 2, kind: output, shape index: {}]
  %s3 = sld [smem:[#allocation0]]
  $region45: #{tpu_custom_call.1} parent=0
    _
  %s5 = ssub.s32 1, %s3
  %s6 = scalar_select 0, %s5, %s3
  $region1: #{tpu_custom_call.1} parent=0
    #allocation2 [shape = 'u8[65536]{0}', space=vmem, size = 0x10000, scoped, tag = 'input window, operand 0']
    #allocation3 [shape = 's32[2]{0}', space=sflag, size = 0x8, scoped, tag = 'scoped memory for tpu_custom_call.1']
    #allocation4 [shape = 's32[2]{0}', space=sflag, size = 0x8, scoped, tag = 'scoped memory for tpu_custom_call.1']
    #allocation5 [shape = 'u8[8192]{0}', space=vmem, size = 0x2000, scoped, tag = 'output window, operand 0']
    %7 = vsyncpa [#allocation3], 0
    %s8 = scalar_lea.sflag [#allocation3], 1
    %9 = vsyncpa %s8, 0
    %10 = vsyncpa [#allocation4], 0
    %s11 = scalar_lea.sflag [#allocation4], 1
    %12 = vsyncpa %s11, 0
    loop: start=0, step=1, limit=4
    $region2: #{tpu_custom_call.1} parent=1 // loop_pre_header
      _
    $region3: #{tpu_custom_call.1} parent=1 // loop_header
      %s14 = sphi 0, %s18
      %p15 = scmp.ge.s32.totalorder %s14, 4
      %s24 = sphi 0, %s26
      %s27 = sphi 0, %s24
      %s28 = sphi 0, %s27
      %s44 = sphi 0, %s28
      %s48 = sphi 0, %s48
      %s50 = sphi 0, %s48
      %s51 = sphi 0, %s50
      %s65 = sphi 0, %s51
      %s71 = sphi 0, %s73
      %s74 = sphi 0, %s71
      %s75 = sphi 0, %s74
      %s91 = sphi 0, %s75
    $region4: #{tpu_custom_call.1} parent=1 // loop_header_branch
      %17 = sbr.rel (%p15) target = $region8
    $region5: #{tpu_custom_call.1} parent=1 // loop_body
      %s19 = ssub.s32 %s14, 1
      %s20 = ssub.s32 %s14, 2
      %s21 = sadd.s32 %s14, 1
      %s22 = ssub.s32 %s14, %s21
      %p23 = scmp.eq.s32.totalorder %s22, 0
      %s25 = sadd.s32 %s24, 1
      %s26 = scalar_select %p23, %s24, %s25
      %p29 = pneg %p23
      %p30 = scmp.eq.s32.totalorder %s14, 1
      %p31 = por %p29, %p30
      %p32 = scmp.ne.s32.totalorder %s24, %s27
      %p33 = scmp.eq.s32.totalorder %s14, 0
      %p34 = por %p32, %p33
      %p35 = scmp.ne.s32.totalorder %s24, %s27
      %p36 = scmp.eq.s32.totalorder %s19, 1
      %p37 = por %p35, %p36
      %p38 = scmp.ne.s32.totalorder %s27, %s28
      %p39 = scmp.eq.s32.totalorder %s19, 0
      %p40 = por %p38, %p39
      %p41 = scmp.ne.s32.totalorder %s27, %s28
      %p42 = scmp.eq.s32.totalorder %s20, 1
      %p43 = por %p41, %p42
      %p45 = scmp.ne.s32.totalorder %s28, %s44
      %p46 = scmp.eq.s32.totalorder %s20, 0
      %p47 = por %p45, %p46
      %s49 = sadd.s32 %s48, 1
      %p52 = scmp.eq.s32.totalorder %s14, 1
      %p53 = scmp.ne.s32.totalorder %s48, %s50
      %p54 = scmp.eq.s32.totalorder %s14, 0
      %p55 = por %p53, %p54
      %p56 = scmp.ne.s32.totalorder %s48, %s50
      %p57 = scmp.eq.s32.totalorder %s19, 1
      %p58 = por %p56, %p57
      %p59 = scmp.ne.s32.totalorder %s50, %s51
      %p60 = scmp.eq.s32.totalorder %s19, 0
      %p61 = por %p59, %p60
      %p62 = scmp.ne.s32.totalorder %s50, %s51
      %p63 = scmp.eq.s32.totalorder %s20, 1
      %p64 = por %p62, %p63
      %p66 = scmp.ne.s32.totalorder %s51, %s65
      %p67 = scmp.eq.s32.totalorder %s20, 0
      %p68 = por %p66, %p67
      %s69 = ssub.s32 %s14, %s21
      %p70 = scmp.eq.s32.totalorder %s69, 0
      %s72 = sadd.s32 %s71, 1
      %s73 = scalar_select %p70, %s71, %s72
      %p76 = pneg %p70
      %p77 = scmp.eq.s32.totalorder %s14, 1
      %p78 = por %p76, %p77
      %p79 = scmp.ne.s32.totalorder %s71, %s74
      %p80 = scmp.eq.s32.totalorder %s14, 0
      %p81 = por %p79, %p80
      %p82 = scmp.ne.s32.totalorder %s71, %s74
      %p83 = scmp.eq.s32.totalorder %s19, 1
      %p84 = por %p82, %p83
      %p85 = scmp.ne.s32.totalorder %s74, %s75
      %p86 = scmp.eq.s32.totalorder %s19, 0
      %p87 = por %p85, %p86
      %p88 = scmp.ne.s32.totalorder %s74, %s75
      %p89 = scmp.eq.s32.totalorder %s20, 1
      %p90 = por %p88, %p89
      %p92 = scmp.ne.s32.totalorder %s75, %s91
      %p93 = scmp.eq.s32.totalorder %s20, 0
      %p94 = por %p92, %p93
      %p95 = scmp.le.s32.totalorder 1, %s14
      %p96 = scmp.lt.s32.totalorder %s14, 3
      %p97 = pnand %p95, %p96
      %p98 = pneg %p97
      // Predicated region
      $region9: #{tpu_custom_call.1} parent=5 // pred_check
        _
      $region10: #{tpu_custom_call.1} parent=5 // pred_check_branch
        %100 = sbr.rel (%p97) target = $region12
      $region11: #{tpu_custom_call.1} parent=5 // pred_region
        %s101 = ssub.s32 %s14, 1
        // Predicated region
        $region13: #{tpu_custom_call.1} parent=11 // pred_check
          %p102 = pneg %p61
        $region14: #{tpu_custom_call.1} parent=11 // pred_check_branch
          %104 = sbr.rel (%p102) target = $region16
        $region15: #{tpu_custom_call.1} parent=11 // pred_region
          _
        $region16: #{tpu_custom_call.1} parent=11 // pred_fallthru
          _
      $region12: #{tpu_custom_call.1} parent=5 // pred_fallthru
        _
      %p105 = scmp.lt.s32.totalorder %s14, 2
      // Predicated region
      $region17: #{tpu_custom_call.1} parent=5 // pred_check
        %p106 = pneg %p105
      $region18: #{tpu_custom_call.1} parent=5 // pred_check_branch
        %108 = sbr.rel (%p106) target = $region20
      $region19: #{tpu_custom_call.1} parent=5 // pred_region
        // Predicated region
        $region21: #{tpu_custom_call.1} parent=19 // pred_check
          %p109 = pneg %p34
        $region22: #{tpu_custom_call.1} parent=19 // pred_check_branch
          %111 = sbr.rel (%p109) target = $region24
        $region23: #{tpu_custom_call.1} parent=19 // pred_region
          %s112 = sand.u32 %s24, 1
          %s113 = scalar_lea.sflag [#allocation3], %s112
          %s114 = sand.u32 %s24, 1
          %s115 = smul.addr %s114, 64
          %s116 = scalar_lea.vmem [#allocation2], %s115
          %s117 = smul.u32 8, %s14
          %s119 = ssub.s32 1024, 1024
          %120 = vsyncadd %s113, %s119
          %s121 = smul.addr %s117, 128
          %s122 = scalar_lea.hbm %s0, %s121
          %s123 = sshll.u32 %s116, 4
          %s124 = int_to_ptr.vmem [resolvable:$true] %s123
          %129 = dma.hbm_to_vmem [thread:$0]  %s122, 1024, %s124, %s113, 128, 128, 8
        $region24: #{tpu_custom_call.1} parent=19 // pred_fallthru
          _
      $region20: #{tpu_custom_call.1} parent=5 // pred_fallthru
        _
      %p130 = scmp.le.s32.totalorder 1, %s14
      %p131 = scmp.lt.s32.totalorder %s14, 3
      %p132 = pnand %p130, %p131
      %p133 = pneg %p132
      // Predicated region
      $region25: #{tpu_custom_call.1} parent=5 // pred_check
        _
      $region26: #{tpu_custom_call.1} parent=5 // pred_check_branch
        %135 = sbr.rel (%p132) target = $region28
      $region27: #{tpu_custom_call.1} parent=5 // pred_region
        %s136 = ssub.s32 %s14, 1
        %s137 = sand.u32 %s27, 1
        %s138 = scalar_lea.sflag [#allocation3], %s137
        %s139 = sand.u32 %s27, 1
        %s140 = smul.addr %s139, 64
        %s141 = scalar_lea.vmem [#allocation2], %s140
        // Predicated region
        $region29: #{tpu_custom_call.1} parent=27 // pred_check
          %p142 = pneg %p40
        $region30: #{tpu_custom_call.1} parent=27 // pred_check_branch
          %144 = sbr.rel (%p142) target = $region32
        $region31: #{tpu_custom_call.1} parent=27 // pred_region
          %145 = dma.done %s138, 1024
        $region32: #{tpu_custom_call.1} parent=27 // pred_fallthru
          _
        %s146 = sand.u32 %s27, 1
        %s147 = scalar_lea.sflag [#allocation3], %s146
        %s148 = sand.u32 %s27, 1
        %s149 = smul.addr %s148, 64
        %s150 = scalar_lea.vmem [#allocation2], %s149
        %p151 = pneg %p40
        %p152 = pneg %p37
        %p153 = pneg %p61
        %p154 = pneg %p58
        %p155 = pneg %p87
        %p156 = pneg %p84
        %s157 = sand.u32 %s74, 1
        %s158 = scalar_lea.sflag [#allocation4], %s157
        %s159 = sand.u32 %s74, 1
        %s160 = smul.addr %s159, 8
        %s161 = scalar_lea.vmem [#allocation5], %s160
        %s162 = smul.u32 8, %s19
        %v163 = vld [vmem:[%s1] sm:$0x1]
        %v164 = vld [vmem:[%s141] sm:$0xff]
        %v165 = vld [vmem:[%s141 + $0x8] sm:$0xff]
        %v166 = vld [vmem:[%s141 + $0x10] sm:$0xff]
        %v167 = vld [vmem:[%s141 + $0x18] sm:$0xff]
        %v168 = vld [vmem:[%s141 + $0x20] sm:$0xff]
        %v169 = vld [vmem:[%s141 + $0x28] sm:$0xff]
        %v170 = vld [vmem:[%s141 + $0x30] sm:$0xff]
        %v171 = vld [vmem:[%s141 + $0x38] sm:$0xff]
        %v173 = vlaneseq
        %v174 = vshrl.u32 %v173, 7
        %v175 = vsub.s32 0, %v174
        %v176 = vrot.slane %v163, %v175
        %v178 = vmul.f32 %v164, %v176
        %v179 = vmul.f32 %v165, %v176
        %v180 = vmul.f32 %v166, %v176
        %v181 = vmul.f32 %v167, %v176
        %v182 = vmul.f32 %v168, %v176
        %v183 = vmul.f32 %v169, %v176
        %v184 = vmul.f32 %v170, %v176
        %v185 = vmul.f32 %v171, %v176
        %vm186 = vcmask 261120
        %v187 = vsel %vm186, %v178, 0.0
        %188 = vadd.xlane.f32.xlu0 %v187
        %v189 = vpop.xlane.xlu0 %188
        %v190 = vsel %vm186, %v179, 0.0
        %191 = vadd.xlane.f32.xlu0 %v190
        %v192 = vpop.xlane.xlu0 %191
        %v193 = vsel %vm186, %v180, 0.0
        %194 = vadd.xlane.f32.xlu0 %v193
        %v195 = vpop.xlane.xlu0 %194
        %v196 = vsel %vm186, %v181, 0.0
        %197 = vadd.xlane.f32.xlu0 %v196
        %v198 = vpop.xlane.xlu0 %197
        %v199 = vsel %vm186, %v182, 0.0
        %200 = vadd.xlane.f32.xlu0 %v199
        %v201 = vpop.xlane.xlu0 %200
        %v202 = vsel %vm186, %v183, 0.0
        %203 = vadd.xlane.f32.xlu0 %v202
        %v204 = vpop.xlane.xlu0 %203
        %v205 = vsel %vm186, %v184, 0.0
        %206 = vadd.xlane.f32.xlu0 %v205
        %v207 = vpop.xlane.xlu0 %206
        %v208 = vsel %vm186, %v185, 0.0
        %209 = vadd.xlane.f32.xlu0 %v208
        %v210 = vpop.xlane.xlu0 %209
        %v219 = vlaneseq
        %v220 = vand.u32 %v219, 127
        %v221 = vlaneseq
        %v222 = vshrl.u32 %v221, 7
        %v223 = vsub.s32 %v220, %v222
        %v224 = vrot.slane %v189, %v223
        %v225 = vlaneseq
        %v226 = vshrl.u32 %v225, 7
        %v227 = vsub.s32 %v220, %v226
        %v228 = vrot.slane %v192, %v227
        %v229 = vlaneseq
        %v230 = vshrl.u32 %v229, 7
        %v231 = vsub.s32 %v220, %v230
        %v232 = vrot.slane %v195, %v231
        %v233 = vlaneseq
        %v234 = vshrl.u32 %v233, 7
        %v235 = vsub.s32 %v220, %v234
        %v236 = vrot.slane %v198, %v235
        %v237 = vlaneseq
        %v238 = vshrl.u32 %v237, 7
        %v239 = vsub.s32 %v220, %v238
        %v240 = vrot.slane %v201, %v239
        %v241 = vlaneseq
        %v242 = vshrl.u32 %v241, 7
        %v243 = vsub.s32 %v220, %v242
        %v244 = vrot.slane %v204, %v243
        %v245 = vlaneseq
        %v246 = vshrl.u32 %v245, 7
        %v247 = vsub.s32 %v220, %v246
        %v248 = vrot.slane %v207, %v247
        %v249 = vlaneseq
        %v250 = vshrl.u32 %v249, 7
        %v251 = vsub.s32 %v220, %v250
        %v252 = vrot.slane %v210, %v251
        %vm253 = vcmask 1041409
        %v254 = vsel %vm253, %v228, %v224
        %vm255 = vcmask 1042434
        %v256 = vsel %vm255, %v232, %v254
        %vm257 = vcmask 1043459
        %v258 = vsel %vm257, %v236, %v256
        %vm259 = vcmask 1044484
        %v260 = vsel %vm259, %v240, %v258
        %vm261 = vcmask 1045509
        %v262 = vsel %vm261, %v244, %v260
        %vm263 = vcmask 1046534
        %v264 = vsel %vm263, %v248, %v262
        %vm265 = vcmask 1047559
        %v266 = vsel %vm265, %v252, %v264
        %vm268 = vcmask 64512
        %v269 = vsel %vm268, %v266, -inf
        %270 = vmax.xlane.f32.xlu0 %v269
        %v271 = vpop.xlane.xlu0 %270
        %v273 = vlaneseq
        %v274 = vshrl.u32 %v273, 7
        %v275 = vsub.s32 0, %v274
        %v276 = vrot.slane %v271, %v275
        %v277 = vlaneseq
        %v278 = vshrl.u32 %v277, 7
        %v279 = vsub.s32 1, %v278
        %v280 = vrot.slane %v271, %v279
        %v281 = vlaneseq
        %v282 = vshrl.u32 %v281, 7
        %v283 = vsub.s32 2, %v282
        %v284 = vrot.slane %v271, %v283
        %v285 = vlaneseq
        %v286 = vshrl.u32 %v285, 7
        %v287 = vsub.s32 3, %v286
        %v288 = vrot.slane %v271, %v287
        %v289 = vlaneseq
        %v290 = vshrl.u32 %v289, 7
        %v291 = vsub.s32 4, %v290
        %v292 = vrot.slane %v271, %v291
        %v293 = vlaneseq
        %v294 = vshrl.u32 %v293, 7
        %v295 = vsub.s32 5, %v294
        %v296 = vrot.slane %v271, %v295
        %v297 = vlaneseq
        %v298 = vshrl.u32 %v297, 7
        %v299 = vsub.s32 6, %v298
        %v300 = vrot.slane %v271, %v299
        %v301 = vlaneseq
        %v302 = vshrl.u32 %v301, 7
        %v303 = vsub.s32 7, %v302
        %v304 = vrot.slane %v271, %v303
        %v313 = vsub.f32 %v189, %v276
        %v314 = vsub.f32 %v192, %v280
        %v315 = vsub.f32 %v195, %v284
        %v316 = vsub.f32 %v198, %v288
        %v317 = vsub.f32 %v201, %v292
        %v318 = vsub.f32 %v204, %v296
        %v319 = vsub.f32 %v207, %v300
        %v320 = vsub.f32 %v210, %v304
        %v321 = vmul.f32 %v313, 1.442695
        %v322 = vpow.pop %v321
        %v323 = vmul.f32 %v314, 1.442695
        %v324 = vpow.pop %v323
        %v325 = vmul.f32 %v315, 1.442695
        %v326 = vpow.pop %v325
        %v327 = vmul.f32 %v316, 1.442695
        %v328 = vpow.pop %v327
        %v329 = vmul.f32 %v317, 1.442695
        %v330 = vpow.pop %v329
        %v331 = vmul.f32 %v318, 1.442695
        %v332 = vpow.pop %v331
        %v333 = vmul.f32 %v319, 1.442695
        %v334 = vpow.pop %v333
        %v335 = vmul.f32 %v320, 1.442695
        %v336 = vpow.pop %v335
        %345 = vset.pattern.permute.xlu0 0
        %346 = vperm.xlu0 %345, %v322
        %v347 = vpop.permute.xlu0 %346
        %348 = vset.pattern.permute.xlu0 0
        %349 = vperm.xlu0 %348, %v324
        %v350 = vpop.permute.xlu0 %349
        %351 = vset.pattern.permute.xlu0 0
        %352 = vperm.xlu0 %351, %v326
        %v353 = vpop.permute.xlu0 %352
        %354 = vset.pattern.permute.xlu0 0
        %355 = vperm.xlu0 %354, %v328
        %v356 = vpop.permute.xlu0 %355
        %357 = vset.pattern.permute.xlu0 0
        %358 = vperm.xlu0 %357, %v330
        %v359 = vpop.permute.xlu0 %358
        %360 = vset.pattern.permute.xlu0 0
        %361 = vperm.xlu0 %360, %v332
        %v362 = vpop.permute.xlu0 %361
        %363 = vset.pattern.permute.xlu0 0
        %364 = vperm.xlu0 %363, %v334
        %v365 = vpop.permute.xlu0 %364
        %366 = vset.pattern.permute.xlu0 0
        %367 = vperm.xlu0 %366, %v336
        %v368 = vpop.permute.xlu0 %367
        %v369 = vlaneseq
        %v370 = vshrl.u32 %v369, 7
        %v371 = vsub.s32 %v220, %v370
        %v372 = vrot.slane %v347, %v371
        %v373 = vlaneseq
        %v374 = vshrl.u32 %v373, 7
        %v375 = vsub.s32 %v220, %v374
        %v376 = vrot.slane %v350, %v375
        %v377 = vlaneseq
        %v378 = vshrl.u32 %v377, 7
        %v379 = vsub.s32 %v220, %v378
        %v380 = vrot.slane %v353, %v379
        %v381 = vlaneseq
        %v382 = vshrl.u32 %v381, 7
        %v383 = vsub.s32 %v220, %v382
        %v384 = vrot.slane %v356, %v383
        %v385 = vlaneseq
        %v386 = vshrl.u32 %v385, 7
        %v387 = vsub.s32 %v220, %v386
        %v388 = vrot.slane %v359, %v387
        %v389 = vlaneseq
        %v390 = vshrl.u32 %v389, 7
        %v391 = vsub.s32 %v220, %v390
        %v392 = vrot.slane %v362, %v391
        %v393 = vlaneseq
        %v394 = vshrl.u32 %v393, 7
        %v395 = vsub.s32 %v220, %v394
        %v396 = vrot.slane %v365, %v395
        %v397 = vlaneseq
        %v398 = vshrl.u32 %v397, 7
        %v399 = vsub.s32 %v220, %v398
        %v400 = vrot.slane %v368, %v399
        %v401 = vsel %vm253, %v376, %v372
        %v402 = vsel %vm255, %v380, %v401
        %v403 = vsel %vm257, %v384, %v402
        %v404 = vsel %vm259, %v388, %v403
        %v405 = vsel %vm261, %v392, %v404
        %v406 = vsel %vm263, %v396, %v405
        %v407 = vsel %vm265, %v400, %v406
        %v409 = vsel %vm268, %v407, 0.0
        %410 = vadd.xlane.f32.xlu0 %v409
        %v411 = vpop.xlane.xlu0 %410
        %v412 = vrcp.pop %v411
        %v414 = vlaneseq
        %v415 = vshrl.u32 %v414, 7
        %v416 = vsub.s32 0, %v415
        %v417 = vrot.slane %v412, %v416
        %v418 = vlaneseq
        %v419 = vshrl.u32 %v418, 7
        %v420 = vsub.s32 1, %v419
        %v421 = vrot.slane %v412, %v420
        %v422 = vlaneseq
        %v423 = vshrl.u32 %v422, 7
        %v424 = vsub.s32 2, %v423
        %v425 = vrot.slane %v412, %v424
        %v426 = vlaneseq
        %v427 = vshrl.u32 %v426, 7
        %v428 = vsub.s32 3, %v427
        %v429 = vrot.slane %v412, %v428
        %v430 = vlaneseq
        %v431 = vshrl.u32 %v430, 7
        %v432 = vsub.s32 4, %v431
        %v433 = vrot.slane %v412, %v432
        %v434 = vlaneseq
        %v435 = vshrl.u32 %v434, 7
        %v436 = vsub.s32 5, %v435
        %v437 = vrot.slane %v412, %v436
        %v438 = vlaneseq
        %v439 = vshrl.u32 %v438, 7
        %v440 = vsub.s32 6, %v439
        %v441 = vrot.slane %v412, %v440
        %v442 = vlaneseq
        %v443 = vshrl.u32 %v442, 7
        %v444 = vsub.s32 7, %v443
        %v445 = vrot.slane %v412, %v444
        %v454 = vmul.f32 %v322, %v417
        %v455 = vmul.f32 %v324, %v421
        %v456 = vmul.f32 %v326, %v425
        %v457 = vmul.f32 %v328, %v429
        %v458 = vmul.f32 %v330, %v433
        %v459 = vmul.f32 %v332, %v437
        %v460 = vmul.f32 %v334, %v441
        %v461 = vmul.f32 %v336, %v445
        %463 = vset.pattern.permute.xlu0 0
        %464 = vperm.xlu0 %463, %v454
        %v465 = vpop.permute.xlu0 %464
        %468 = vset.pattern.permute.xlu0 0
        %469 = vperm.xlu0 %468, %v455
        %v470 = vpop.permute.xlu0 %469
        %473 = vset.pattern.permute.xlu0 0
        %474 = vperm.xlu0 %473, %v456
        %v475 = vpop.permute.xlu0 %474
        %478 = vset.pattern.permute.xlu0 0
        %479 = vperm.xlu0 %478, %v457
        %v480 = vpop.permute.xlu0 %479
        %483 = vset.pattern.permute.xlu0 0
        %484 = vperm.xlu0 %483, %v458
        %v485 = vpop.permute.xlu0 %484
        %488 = vset.pattern.permute.xlu0 0
        %489 = vperm.xlu0 %488, %v459
        %v490 = vpop.permute.xlu0 %489
        %493 = vset.pattern.permute.xlu0 0
        %494 = vperm.xlu0 %493, %v460
        %v495 = vpop.permute.xlu0 %494
        %498 = vset.pattern.permute.xlu0 0
        %499 = vperm.xlu0 %498, %v461
        %v500 = vpop.permute.xlu0 %499
        %v502 = vmul.f32 %v465, %v164
        %v503 = vmul.f32 %v470, %v165
        %v504 = vmul.f32 %v475, %v166
        %v505 = vmul.f32 %v480, %v167
        %v506 = vmul.f32 %v485, %v168
        %v507 = vmul.f32 %v490, %v169
        %v508 = vmul.f32 %v495, %v170
        %v509 = vmul.f32 %v500, %v171
        %v510 = vsel %vm186, %v502, 0.0
        %v511 = vrot.slane %v510, 4
        %v512 = vadd.f32 %v510, %v511
        %v513 = vrot.slane %v512, 2
        %v514 = vadd.f32 %v512, %v513
        %v515 = vrot.slane %v514, 1
        %v516 = vadd.f32 %v514, %v515
        %v517 = vsel %vm186, %v503, 0.0
        %v518 = vrot.slane %v517, 4
        %v519 = vadd.f32 %v517, %v518
        %v520 = vrot.slane %v519, 2
        %v521 = vadd.f32 %v519, %v520
        %v522 = vrot.slane %v521, 1
        %v523 = vadd.f32 %v521, %v522
        %v524 = vsel %vm186, %v504, 0.0
        %v525 = vrot.slane %v524, 4
        %v526 = vadd.f32 %v524, %v525
        %v527 = vrot.slane %v526, 2
        %v528 = vadd.f32 %v526, %v527
        %v529 = vrot.slane %v528, 1
        %v530 = vadd.f32 %v528, %v529
        %v531 = vsel %vm186, %v505, 0.0
        %v532 = vrot.slane %v531, 4
        %v533 = vadd.f32 %v531, %v532
        %v534 = vrot.slane %v533, 2
        %v535 = vadd.f32 %v533, %v534
        %v536 = vrot.slane %v535, 1
        %v537 = vadd.f32 %v535, %v536
        %v538 = vsel %vm186, %v506, 0.0
        %v539 = vrot.slane %v538, 4
        %v540 = vadd.f32 %v538, %v539
        %v541 = vrot.slane %v540, 2
        %v542 = vadd.f32 %v540, %v541
        %v543 = vrot.slane %v542, 1
        %v544 = vadd.f32 %v542, %v543
        %v545 = vsel %vm186, %v507, 0.0
        %v546 = vrot.slane %v545, 4
        %v547 = vadd.f32 %v545, %v546
        %v548 = vrot.slane %v547, 2
        %v549 = vadd.f32 %v547, %v548
        %v550 = vrot.slane %v549, 1
        %v551 = vadd.f32 %v549, %v550
        %v552 = vsel %vm186, %v508, 0.0
        %v553 = vrot.slane %v552, 4
        %v554 = vadd.f32 %v552, %v553
        %v555 = vrot.slane %v554, 2
        %v556 = vadd.f32 %v554, %v555
        %v557 = vrot.slane %v556, 1
        %v558 = vadd.f32 %v556, %v557
        %v559 = vsel %vm186, %v509, 0.0
        %v560 = vrot.slane %v559, 4
        %v561 = vadd.f32 %v559, %v560
        %v562 = vrot.slane %v561, 2
        %v563 = vadd.f32 %v561, %v562
        %v564 = vrot.slane %v563, 1
        %v565 = vadd.f32 %v563, %v564
        %v574 = vsel %vm253, %v523, %v516
        %v575 = vsel %vm255, %v530, %v574
        %v576 = vsel %vm257, %v537, %v575
        %v577 = vsel %vm259, %v544, %v576
        %v578 = vsel %vm261, %v551, %v577
        %v579 = vsel %vm263, %v558, %v578
        %v580 = vsel %vm265, %v565, %v579
        %582 = vst.msk [vmem:[%s161] sm:$0xff] %vm186, %v580
        %s583 = sand.u32 %s74, 1
        %s584 = scalar_lea.sflag [#allocation4], %s583
        %s585 = sand.u32 %s74, 1
        %s586 = smul.addr %s585, 8
        %s587 = scalar_lea.vmem [#allocation5], %s586
        // Predicated region
        $region33: #{tpu_custom_call.1} parent=27 // pred_check
          %p588 = pneg %p84
        $region34: #{tpu_custom_call.1} parent=27 // pred_check_branch
          %590 = sbr.rel (%p588) target = $region36
        $region35: #{tpu_custom_call.1} parent=27 // pred_region
          %s592 = ssub.s32 128, 128
          %593 = vsyncadd %s584, %s592
          %s594 = smul.addr %s19, 128
          %s595 = scalar_lea.hbm %s2, %s594
          %s597 = sshll.u32 %s587, 4
          %s598 = int_to_ptr.vmem [resolvable:$true] %s597
          %600 = dma.vmem_to_hbm [thread:$0]  %s598, 128, %s595, %s584
        $region36: #{tpu_custom_call.1} parent=27 // pred_fallthru
          _
      $region28: #{tpu_custom_call.1} parent=5 // pred_fallthru
        _
      %p601 = scmp.le.s32.totalorder 2, %s14
      // Predicated region
      $region37: #{tpu_custom_call.1} parent=5 // pred_check
        %p602 = pneg %p601
      $region38: #{tpu_custom_call.1} parent=5 // pred_check_branch
        %604 = sbr.rel (%p602) target = $region40
      $region39: #{tpu_custom_call.1} parent=5 // pred_region
        %s605 = ssub.s32 %s14, 2
        // Predicated region
        $region41: #{tpu_custom_call.1} parent=39 // pred_check
          %p606 = pneg %p90
        $region42: #{tpu_custom_call.1} parent=39 // pred_check_branch
          %608 = sbr.rel (%p606) target = $region44
        $region43: #{tpu_custom_call.1} parent=39 // pred_region
          %s609 = sand.u32 %s75, 1
          %s610 = scalar_lea.sflag [#allocation4], %s609
          %s611 = sand.u32 %s75, 1
          %s612 = smul.addr %s611, 8
          %s613 = scalar_lea.vmem [#allocation5], %s612
          %614 = dma.done %s610, 128
        $region44: #{tpu_custom_call.1} parent=39 // pred_fallthru
          _
      $region40: #{tpu_custom_call.1} parent=5 // pred_fallthru
        _
    $region6: #{tpu_custom_call.1} parent=1 // loop_footer
      %s18 = sadd.s32 1, %s14
    $region7: #{tpu_custom_call.1} parent=1 // loop_footer_branch
      %13 = sbr.rel target = $region3
    $region8: #{tpu_custom_call.1} parent=1 // loop_exit
      _
    %615 = vsyncpa [#allocation3], 1
    %s616 = scalar_lea.sflag [#allocation3], 1
    %617 = vsyncpa %s616, 1
    %618 = vsyncpa [#allocation4], 1
    %s619 = scalar_lea.sflag [#allocation4], 1
    %620 = vsyncpa %s619, 1

</llo_original>
